<compile_context>
chip_gen: v5e
topology: v5e:2x2
jax: 0.10.0
libtpu: 0.0.40
codegen_flags: <defaults>
</compile_context>

<pallas_src>
import functools

import jax
import jax.numpy as jnp
from jax.experimental import pallas as pl
from jax.experimental.pallas import tpu as pltpu

SIGMA = 0.1
IS_RELATIVE_DETACH = True  # forward value identical; affects grads only.

_LANES = 128
_SUBLANES = 8
_TARGET_TILE_ROWS = 1024  # 1024 x 128 x 4B = 512 KiB per f32 block


def _gaussian_noise_kernel_hwprng(seed_ref, x_ref, o_ref, *, sigma):
    """out = x * (1 + sigma * N(0,1)); noise drawn from the TPU HW PRNG."""
    # Per-tile seed: each grid step (hence each TensorCore when the axis is
    # "parallel") draws an independent noise stream.
    pltpu.prng_seed(seed_ref[0] + pl.program_id(0))
    x = x_ref[...]
    noise = pltpu.stateful_normal(x.shape, jnp.float32)
    # Compute the gain in f32, cast once, multiply in x's dtype (keeps bf16
    # inputs in bf16 on v6e/v7x; no f32 copy of the whole x tile).
    gain = (1.0 + sigma * noise).astype(x.dtype)
    o_ref[...] = x * gain


def _gaussian_noise_kernel_fused(x_ref, n_ref, o_ref, *, sigma):
    """out = x * (1 + sigma * noise) with precomputed noise (non-TPU fallback)."""
    x = x_ref[...]
    gain = (1.0 + sigma * n_ref[...]).astype(x.dtype)
    o_ref[...] = x * gain


def _round_up(n, m):
    return -(-n // m) * m


def gaussian_noise(x, seed, sigma=SIGMA):
    """Apply relative Gaussian noise: x + sigma * x * N(0,1)."""
    if sigma == 0:
        return x

    orig_shape = x.shape
    orig_dtype = x.dtype
    total = x.size

    # Flatten to a lane-dense (rows, 128) slab; pad (instead of asserting) so
    # arbitrary NCHW shapes work, then trim on output.
    rows = _round_up(total, _LANES) // _LANES
    if rows <= _TARGET_TILE_ROWS:
        tile_rows = _round_up(rows, _SUBLANES)
        rows_padded = tile_rows
    else:
        tile_rows = _TARGET_TILE_ROWS
        rows_padded = _round_up(rows, tile_rows)
    grid = (rows_padded // tile_rows,)

    flat = x.reshape(-1)
    pad = rows_padded * _LANES - total
    if pad:
        flat = jnp.pad(flat, (0, pad))
    x2d = flat.reshape(rows_padded, _LANES)

    block = (tile_rows, _LANES)
    out_shape = jax.ShapeDtypeStruct((rows_padded, _LANES), orig_dtype)
    compiler_params = pltpu.CompilerParams(dimension_semantics=("parallel",))

    if jax.default_backend() == "tpu":
        seed_arr = jnp.asarray([seed], dtype=jnp.int32)
        out2d = pl.pallas_call(
            functools.partial(_gaussian_noise_kernel_hwprng, sigma=float(sigma)),
            out_shape=out_shape,
            grid_spec=pltpu.PrefetchScalarGridSpec(
                num_scalar_prefetch=1,
                grid=grid,
                in_specs=[pl.BlockSpec(block, lambda i, seed_ref: (i, 0))],
                out_specs=pl.BlockSpec(block, lambda i, seed_ref: (i, 0)),
            ),
            compiler_params=compiler_params,
            # x2d is a fresh padded copy; alias it to the output to drop the
            # extra HBM allocation (index 1 = x2d; index 0 is the seed).
            input_output_aliases={1: 0},
        )(seed_arr, x2d)
    else:
        # TPU hardware-PRNG primitives have no CPU/interpret lowering, so draw
        # the noise with jax.random and fuse only the scale-and-add in Pallas.
        noise2d = jax.random.normal(
            jax.random.PRNGKey(seed), (rows_padded, _LANES), jnp.float32)
        out2d = pl.pallas_call(
            functools.partial(_gaussian_noise_kernel_fused, sigma=float(sigma)),
            out_shape=out_shape,
            grid=grid,
            in_specs=[pl.BlockSpec(block, lambda i: (i, 0)),
                      pl.BlockSpec(block, lambda i: (i, 0))],
            out_specs=pl.BlockSpec(block, lambda i: (i, 0)),
            compiler_params=compiler_params,
        )(x2d, noise2d)

    return out2d.reshape(-1)[:total].reshape(orig_shape)


if __name__ == "__main__":
    key = jax.random.PRNGKey(0)
    # Small NCHW input consistent with a conv-feature-map regularizer.
    x = jax.random.normal(key, (2, 4, 16, 16), dtype=jnp.float32)

    out = gaussian_noise(x, seed=1234, sigma=SIGMA)
    out = jax.block_until_ready(out)

    assert out.shape == x.shape and out.dtype == x.dtype
    # Sanity: noise is relative, so relative deviation should be O(sigma).
    rel = jnp.abs(out - x) / (jnp.abs(x) + 1e-8)
    assert bool(jnp.isfinite(out).all())
    assert float(rel.mean()) < 1.0  # sigma=0.1 -> mean |N(0,1)|*0.1 ~ 0.08

    print("KERNEL_OK")
</pallas_src>

<mosaic_0001>
module attributes {stable_mosaic.version = 11 : i64} {
  func.func @_gaussian_noise_kernel_fused(%arg0: i32, %arg1: memref<16x128xf32, #tpu.memory_space<vmem>>, %arg2: memref<16x128xf32, #tpu.memory_space<vmem>>, %arg3: memref<16x128xf32, #tpu.memory_space<vmem>>) attributes {dimension_semantics = [#tpu.dimension_semantics<parallel>], iteration_bounds = array<i64: 1>, scalar_prefetch = 0 : i64, scratch_operands = 0 : i64, tpu.core_type = #tpu.core_type<tc>, window_params = [{transform_indices = @transform_0, window_bounds = array<i64: 16, 128>}, {transform_indices = @transform_1, window_bounds = array<i64: 16, 128>}, {transform_indices = @transform_2, window_bounds = array<i64: 16, 128>}]} {
    %c0 = arith.constant 0 : index
    %c0_0 = arith.constant 0 : index
    %0 = vector.load %arg1[%c0, %c0_0] : memref<16x128xf32, #tpu.memory_space<vmem>>, vector<16x128xf32>
    %c0_1 = arith.constant 0 : index
    %c0_2 = arith.constant 0 : index
    %1 = vector.load %arg2[%c0_1, %c0_2] : memref<16x128xf32, #tpu.memory_space<vmem>>, vector<16x128xf32>
    %cst = arith.constant 1.000000e-01 : f32
    %2 = vector.broadcast %cst : f32 to vector<16x128xf32>
    %3 = arith.mulf %2, %1 : vector<16x128xf32>
    %cst_3 = arith.constant 1.000000e+00 : f32
    %4 = vector.broadcast %cst_3 : f32 to vector<16x128xf32>
    %5 = arith.addf %4, %3 : vector<16x128xf32>
    %6 = arith.mulf %0, %5 : vector<16x128xf32>
    %c0_4 = arith.constant 0 : index
    %c0_5 = arith.constant 0 : index
    %7 = vector.load %arg3[%c0_4, %c0_5] : memref<16x128xf32, #tpu.memory_space<vmem>>, vector<16x128xf32>
    tpu.vector_store %arg3[%c0_4, %c0_5], %6 {strides = array<i32>} : memref<16x128xf32, #tpu.memory_space<vmem>>, vector<16x128xf32>,
    return
  }
  func.func @transform_0(%arg0: i32) -> (i32, i32) {
    %c0_i32 = arith.constant 0 : i32
    %c0_i32_0 = arith.constant 0 : i32
    return %arg0, %c0_i32 : i32, i32
  }
  func.func @transform_1(%arg0: i32) -> (i32, i32) {
    %c0_i32 = arith.constant 0 : i32
    %c0_i32_0 = arith.constant 0 : i32
    return %arg0, %c0_i32 : i32, i32
  }
  func.func @transform_2(%arg0: i32) -> (i32, i32) {
    %c0_i32 = arith.constant 0 : i32
    %c0_i32_0 = arith.constant 0 : i32
    return %arg0, %c0_i32 : i32, i32
  }
}

</mosaic_0001>

<llo_original>
// kernel: tpu_custom_call.1
$region0: #{tpu_custom_call.1}
  #allocation0 [shape = 'u32[]', space=smem, size = 0x4, offset = 0x4, fixed_abs, tag = 'smem constant byte address 0x4 - core index']
  #allocation1 [shape = 'u32[72,128]{1,0:T(1,128)}', space=vmem, size = 0x9000, scoped, tag = 'internal scratch']
  %s0 = inlined_call_operand.hbm [shape: f32[16,128], index: 0, kind: input, shape index: {}]
  %s1 = inlined_call_operand.hbm [shape: f32[16,128], index: 1, kind: input, shape index: {}]
  %s2 = inlined_call_operand.hbm [shape: f32[16,128], index: 2, kind: output, shape index: {}]
  %s3 = sld [smem:[#allocation0]]
  $region26: #{tpu_custom_call.1} parent=0
    _
  %s5 = ssub.s32 1, %s3
  %s6 = scalar_select 0, %s5, %s3
  $region1: #{tpu_custom_call.1} parent=0
    #allocation2 [shape = 'u8[8192]{0}', space=vmem, size = 0x2000, scoped, tag = 'input window, operand 0, single buffered']
    #allocation3 [shape = 's32[1]{0}', space=sflag, size = 0x4, scoped, tag = 'scoped memory for tpu_custom_call.1']
    #allocation4 [shape = 's32[1]{0}', space=sflag, size = 0x4, scoped, tag = 'scoped memory for tpu_custom_call.1']
    #allocation5 [shape = 'u8[8192]{0}', space=vmem, size = 0x2000, scoped, tag = 'input window, operand 1, single buffered']
    #allocation6 [shape = 's32[1]{0}', space=sflag, size = 0x4, scoped, tag = 'scoped memory for tpu_custom_call.1']
    #allocation7 [shape = 'u8[8192]{0}', space=vmem, size = 0x2000, scoped, tag = 'output window, operand 0, single buffered']
    %7 = vsyncpa [#allocation3], 0
    %8 = vsyncpa [#allocation6], 0
    %9 = vsyncpa [#allocation4], 0
    // Predicated region
    $region2: #{tpu_custom_call.1} parent=1 // pred_check
      _
    $region3: #{tpu_custom_call.1} parent=1 // pred_check_branch
      %11 = sbr.rel (0) target = $region5
    $region4: #{tpu_custom_call.1} parent=1 // pred_region
      %13 = vsyncadd [#allocation3], 0
      %s14 = sshll.u32 %s0, 4
      %s15 = int_to_ptr.hbm [resolvable:$true] %s14
      %s16 = sshll.u32 [#allocation2], 4
      %s17 = int_to_ptr.vmem [resolvable:$true] %s16
      %22 = dma.hbm_to_vmem [thread:$0]  %s15, 256, %s17, [#allocation3], 128, 128, 8
    $region5: #{tpu_custom_call.1} parent=1 // pred_fallthru
      _
    // Predicated region
    $region6: #{tpu_custom_call.1} parent=1 // pred_check
      _
    $region7: #{tpu_custom_call.1} parent=1 // pred_check_branch
      %24 = sbr.rel (0) target = $region9
    $region8: #{tpu_custom_call.1} parent=1 // pred_region
      %26 = vsyncadd [#allocation6], 0
      %s27 = sshll.u32 %s1, 4
      %s28 = int_to_ptr.hbm [resolvable:$true] %s27
      %s29 = sshll.u32 [#allocation5], 4
      %s30 = int_to_ptr.vmem [resolvable:$true] %s29
      %35 = dma.hbm_to_vmem [thread:$0]  %s28, 256, %s30, [#allocation6], 128, 128, 8
    $region9: #{tpu_custom_call.1} parent=1 // pred_fallthru
      _
    // Predicated region
    $region10: #{tpu_custom_call.1} parent=1 // pred_check
      _
    $region11: #{tpu_custom_call.1} parent=1 // pred_check_branch
      %37 = sbr.rel (0) target = $region13
    $region12: #{tpu_custom_call.1} parent=1 // pred_region
      %39 = dma.done [#allocation3], 256
    $region13: #{tpu_custom_call.1} parent=1 // pred_fallthru
      _
    // Predicated region
    $region14: #{tpu_custom_call.1} parent=1 // pred_check
      _
    $region15: #{tpu_custom_call.1} parent=1 // pred_check_branch
      %41 = sbr.rel (0) target = $region17
    $region16: #{tpu_custom_call.1} parent=1 // pred_region
      %43 = dma.done [#allocation6], 256
    $region17: #{tpu_custom_call.1} parent=1 // pred_fallthru
      _
    %v44 = vld [vmem:[#allocation2] sm:$0xff]
    %v45 = vld [vmem:[#allocation2 + $0x8] sm:$0xff]
    %v46 = vld [vmem:[#allocation5] sm:$0xff]
    %v47 = vld [vmem:[#allocation5 + $0x8] sm:$0xff]
    %v48 = vmul.f32 %v46, 0.1
    %v49 = vmul.f32 %v47, 0.1
    %v50 = vadd.f32 %v48, 1.0
    %v51 = vadd.f32 %v49, 1.0
    %v52 = vmul.f32 %v44, %v50
    %v53 = vmul.f32 %v45, %v51
    %54 = vst [vmem:[#allocation7] sm:$0xff] %v52
    %55 = vst [vmem:[#allocation7 + $0x8] sm:$0xff] %v53
    // Predicated region
    $region18: #{tpu_custom_call.1} parent=1 // pred_check
      _
    $region19: #{tpu_custom_call.1} parent=1 // pred_check_branch
      %57 = sbr.rel (0) target = $region21
    $region20: #{tpu_custom_call.1} parent=1 // pred_region
      %59 = vsyncadd [#allocation4], 0
      %s60 = sshll.u32 [#allocation7], 4
      %s61 = int_to_ptr.vmem [resolvable:$true] %s60
      %s62 = sshll.u32 %s2, 4
      %s63 = int_to_ptr.hbm [resolvable:$true] %s62
      %68 = dma.vmem_to_hbm [thread:$0]  %s61, 256, %s63, [#allocation4], 128, 128, 8
    $region21: #{tpu_custom_call.1} parent=1 // pred_fallthru
      _
    // Predicated region
    $region22: #{tpu_custom_call.1} parent=1 // pred_check
      _
    $region23: #{tpu_custom_call.1} parent=1 // pred_check_branch
      %70 = sbr.rel (0) target = $region25
    $region24: #{tpu_custom_call.1} parent=1 // pred_region
      %72 = dma.done [#allocation4], 256
    $region25: #{tpu_custom_call.1} parent=1 // pred_fallthru
      _
    %73 = vsyncpa [#allocation3], 1
    %74 = vsyncpa [#allocation6], 1
    %75 = vsyncpa [#allocation4], 1

</llo_original>
